<compile_context>
chip_gen: v6e
topology: v6e:2x2x1
jax: 0.10.0
libtpu: 0.0.40
codegen_flags: <defaults>
</compile_context>

<pallas_src>
import math
import functools

import jax
import jax.numpy as jnp
from jax import lax
from jax.experimental import pallas as pl
from jax.experimental.pallas import tpu as pltpu


def _round_up(v, m):
    return ((v + m - 1) // m) * m


_ACTIVATIONS = {
    "relu": lambda x: jnp.maximum(x, 0.0),
    "softplus": jax.nn.softplus,
    "tanh": jnp.tanh,
}


def _ctrnn_recurrence_kernel(drive_ref, whh_ref, act_ref, h_ref,
                             *, alpha, nonlinearity, time_tile):
    """One grid step = `time_tile` recurrence steps for one batch tile.

    drive_ref : (TIME_TILE, B_TILE, Hp) f32  precomputed x@W_enc^T + (b_enc+b_hh) + noise
    whh_ref   : (Hp, Hp)                     W_hh^T, VMEM-resident (Buffered(1))
    act_ref   : (TIME_TILE, B_TILE, Hp) f32  rnn activity output
    h_ref     : (B_TILE, Hp) f32 scratch     hidden state carried across time tiles
    """
    tt = pl.program_id(1)

    @pl.when(tt == 0)
    def _():
        # init_hidden(): zeros at the start of each batch tile's time sweep.
        h_ref[...] = jnp.zeros_like(h_ref)

    act_fn = _ACTIVATIONS[nonlinearity]
    whh = whh_ref[...]  # loaded once per grid step; resident across the whole sweep

    # TODO(synk): for large H on the serial chain, drive the MXU explicitly with
    # pltpu.matmul_push_rhs once per grid step + matmul_acc_lhs per timestep to
    # avoid re-pushing W_hh^T every step.
    def step(i, h):
        # Only this HxH matmul is truly sequential; everything else was hoisted.
        pre = jnp.dot(h.astype(whh.dtype), whh, preferred_element_type=jnp.float32)
        pre = pre + drive_ref[i]
        h_new = (1.0 - alpha) * h + alpha * act_fn(pre)   # f32 elementwise (v5e-safe)
        act_ref[i] = h_new.astype(act_ref.dtype)
        return h_new

    # Unrolled so the LLO scheduler sees the full dependency chain.
    h_ref[...] = lax.fori_loop(0, time_tile, step, h_ref[...], unroll=True)


def yang19_ctrnn_forward(x, params, *, alpha, nonlinearity="relu", noise=None,
                         compute_dtype=jnp.float32, time_tile=8):
    """x: (T, B, I).  params: enc_w (H,I), enc_b (H,), h2h_w (H,H), h2h_b (H,),
    dec_w (O,H), dec_b (O,).  Returns (out (T*B, O), rnn_activity (T, B, H))."""
    w_in, b_in = params["enc_w"], params["enc_b"]
    w_hh, b_hh = params["h2h_w"], params["h2h_b"]
    w_dec, b_dec = params["dec_w"], params["dec_b"]

    T, B, I = x.shape
    H = w_hh.shape[0]
    O = w_dec.shape[0]

    if noise is None:
        noise = jnp.zeros((T, B, H), jnp.float32)
    # TODO(synk): for production, generate the recurrent noise in the drive precompute
    # (or in-kernel via pltpu.prng_seed/prng_random_bits) instead of materializing it.

    # ---- encoder hoisted out of the recurrence: one M=T*B matmul (XLA) ----------
    drive = jnp.dot(x.astype(jnp.float32).reshape(T * B, I),
                    w_in.T.astype(jnp.float32),
                    preferred_element_type=jnp.float32).reshape(T, B, H)
    drive = drive + (b_in + b_hh).astype(jnp.float32) + noise.astype(jnp.float32)

    # ---- TPU-friendly tiling ------------------------------------------------------
    Hp = _round_up(H, 128)                 # lane-dense activity stores
    Bp = _round_up(B, 8)
    if Bp >= 16:
        # >=2 batch tiles so the "parallel" axis spans both v7x TensorCores;
        # cap at 128 = v5e MXU-native M.
        B_TILE = min(128, _round_up(Bp // 2, 8))
    else:
        B_TILE = Bp
    Bp = _round_up(Bp, B_TILE)

    TIME_TILE = max(1, min(int(time_tile), T))
    Tp = _round_up(T, TIME_TILE)

    drive_p = jnp.zeros((Tp, Bp, Hp), jnp.float32).at[:T, :B, :H].set(drive)
    whh_t = jnp.zeros((Hp, Hp), compute_dtype).at[:H, :H].set(w_hh.T.astype(compute_dtype))

    grid = (Bp // B_TILE, Tp // TIME_TILE)
    kernel = functools.partial(_ctrnn_recurrence_kernel, alpha=float(alpha),
                               nonlinearity=nonlinearity, time_tile=TIME_TILE)

    # VMEM budget: resident weight (single buffer) + double-buffered drive/activity
    # tiles + hidden-state scratch, with headroom.
    est = (Hp * Hp * jnp.dtype(compute_dtype).itemsize        # W_hh^T (Buffered(1))
           + 2 * 2 * TIME_TILE * B_TILE * Hp * 4               # drive + activity tiles
           + B_TILE * Hp * 4)                                  # hidden-state scratch
    vmem_limit = int(min(100 * 1024 * 1024, max(32 * 1024 * 1024, 2 * est)))

    act_p = pl.pallas_call(
        kernel,
        out_shape=jax.ShapeDtypeStruct((Tp, Bp, Hp), jnp.float32),
        grid_spec=pltpu.PrefetchScalarGridSpec(
            num_scalar_prefetch=0,
            grid=grid,
            in_specs=[
                # streamed drive slab: TIME_TILE steps per DMA
                pl.BlockSpec((TIME_TILE, B_TILE, Hp), lambda bt, tt: (tt, bt, 0)),
                # resident recurrent weight: constant index_map, single buffer
                pl.BlockSpec((Hp, Hp), lambda bt, tt: (0, 0),
                             pipeline_mode=pl.Buffered(1)),
            ],
            out_specs=pl.BlockSpec((TIME_TILE, B_TILE, Hp), lambda bt, tt: (tt, bt, 0)),
            scratch_shapes=[pltpu.VMEM((B_TILE, Hp), jnp.float32)],   # hidden state
        ),
        compiler_params=pltpu.CompilerParams(
            # time axis is a recurrence -> "arbitrary"; batch tiles are independent
            # -> "parallel" so v7x's two TensorCores split them.
            dimension_semantics=("parallel", "arbitrary"),
            vmem_limit_bytes=vmem_limit,
        ),
    )(drive_p, whh_t)

    rnn_activity = act_p[:T, :B, :H]

    # ---- decoder hoisted out of the time loop: one M=T*B matmul (XLA) ------------
    out = (jnp.dot(rnn_activity.reshape(T * B, H), w_dec.T.astype(jnp.float32),
                   preferred_element_type=jnp.float32)
           + b_dec.astype(jnp.float32))
    return out, rnn_activity


if __name__ == "__main__":
    key = jax.random.PRNGKey(0)
    ks = jax.random.split(key, 10)

    # Small shapes consistent with the module's cog-task path.
    seq_len, input_size = 10, 16
    hidden_size, output_size = 64, 33
    dt, tau, sigma_rec = 20.0, 100.0, 0.05
    alpha = dt / tau                                   # 0.2
    sigma = math.sqrt(2.0 * alpha) * sigma_rec
    nonlinearity = "relu"

    # Parameters mimicking the PyTorch init (Linear default; h2h = 0.5 * eye).
    bi = 1.0 / math.sqrt(input_size)
    bh = 1.0 / math.sqrt(hidden_size)
    params = {
        "enc_w": jax.random.uniform(ks[0], (hidden_size, input_size), jnp.float32, -bi, bi),
        "enc_b": jax.random.uniform(ks[1], (hidden_size,), jnp.float32, -bi, bi),
        "h2h_w": 0.5 * jnp.eye(hidden_size, dtype=jnp.float32),
        "h2h_b": jax.random.uniform(ks[2], (hidden_size,), jnp.float32, -bh, bh),
        "dec_w": jax.random.uniform(ks[3], (output_size, hidden_size), jnp.float32, -bh, bh),
        "dec_b": jax.random.uniform(ks[4], (output_size,), jnp.float32, -bh, bh),
    }

    # Pure-JAX reference of the module's forward.
    def reference(x, noise):
        act = _ACTIVATIONS[nonlinearity]

        def step(h, inp):
            xt, nt = inp
            pre = (xt @ params["enc_w"].T + params["enc_b"]
                   + h @ params["h2h_w"].T + params["h2h_b"] + nt)
            h_new = (1.0 - alpha) * h + alpha * act(pre)
            return h_new, h_new

        h0 = jnp.zeros((x.shape[1], hidden_size), jnp.float32)
        _, hs = lax.scan(step, h0, (x, noise))
        out = hs @ params["dec_w"].T + params["dec_b"]
        return out.reshape(-1, output_size), hs

    # --- config 1: tiny batch (1 batch tile), T=10 -> 2 time tiles (padded) -------
    batch = 4
    x = jax.random.normal(ks[5], (seq_len, batch, input_size), jnp.float32)
    noise = sigma * jax.random.normal(ks[6], (seq_len, batch, hidden_size), jnp.float32)
    ref_out, ref_act = reference(x, noise)

    out32, act32 = yang19_ctrnn_forward(
        x, params, alpha=alpha, nonlinearity=nonlinearity, noise=noise,
        compute_dtype=jnp.float32, time_tile=8)
    jax.block_until_ready((out32, act32))
    assert out32.shape == (seq_len * batch, output_size)
    assert act32.shape == (seq_len, batch, hidden_size)
    assert jnp.allclose(act32, ref_act, atol=1e-4, rtol=1e-4)
    assert jnp.allclose(out32, ref_out, atol=1e-4, rtol=1e-4)

    # bf16 recurrent-weight path (half W_hh traffic / 2x MXU; f32 carry + accumulate).
    out16, act16 = yang19_ctrnn_forward(
        x, params, alpha=alpha, nonlinearity=nonlinearity, noise=noise,
        compute_dtype=jnp.bfloat16, time_tile=8)
    jax.block_until_ready((out16, act16))
    assert jnp.allclose(act16, ref_act, atol=2e-2, rtol=2e-2)
    assert jnp.allclose(out16, ref_out, atol=2e-2, rtol=2e-2)

    # --- config 2: batch=20 -> 2 batch tiles (exercises the "parallel" axis),
    #     TIME_TILE=4 -> 3 time tiles with time padding. ----------------------------
    batch2 = 20
    x2 = jax.random.normal(ks[7], (seq_len, batch2, input_size), jnp.float32)
    noise2 = sigma * jax.random.normal(ks[8], (seq_len, batch2, hidden_size), jnp.float32)
    ref_out2, ref_act2 = reference(x2, noise2)
    out2, act2 = yang19_ctrnn_forward(
        x2, params, alpha=alpha, nonlinearity=nonlinearity, noise=noise2,
        compute_dtype=jnp.float32, time_tile=4)
    jax.block_until_ready((out2, act2))
    assert out2.shape == (seq_len * batch2, output_size)
    assert jnp.allclose(act2, ref_act2, atol=1e-4, rtol=1e-4)
    assert jnp.allclose(out2, ref_out2, atol=1e-4, rtol=1e-4)

    print("KERNEL_OK")
</pallas_src>

<mosaic_0001>
module attributes {stable_mosaic.version = 11 : i64} {
  func.func @_ctrnn_recurrence_kernel(%arg0: i32, %arg1: i32, %arg2: memref<8x8x128xf32, #tpu.memory_space<vmem>>, %arg3: memref<128x128xf32, #tpu.memory_space<vmem>>, %arg4: memref<8x8x128xf32, #tpu.memory_space<vmem>>, %arg5: memref<8x128xf32, #tpu.memory_space<vmem>>) attributes {dimension_semantics = [#tpu.dimension_semantics<parallel>, #tpu.dimension_semantics<arbitrary>], iteration_bounds = array<i64: 1, 2>, scalar_prefetch = 0 : i64, scratch_operands = 1 : i64, tpu.core_type = #tpu.core_type<tc>, window_params = [{transform_indices = @transform_0, window_bounds = array<i64: 8, 8, 128>}, {pipeline_mode = #tpu.pipeline_mode<synchronous>, transform_indices = @transform_1, window_bounds = array<i64: 128, 128>}, {transform_indices = @transform_2, window_bounds = array<i64: 8, 8, 128>}]} {
    %c0_i32 = arith.constant 0 : i32
    %0 = arith.cmpi eq, %arg1, %c0_i32 : i32
    %1 = arith.extui %0 : i1 to i32
    %c0_i32_0 = arith.constant 0 : i32
    %2 = arith.cmpi ne, %1, %c0_i32_0 : i32
    scf.if %2 {
      %cst_70 = arith.constant 0.000000e+00 : f32
      %134 = vector.broadcast %cst_70 : f32 to vector<8x128xf32>
      %c0_71 = arith.constant 0 : index
      %c0_72 = arith.constant 0 : index
      %135 = vector.load %arg5[%c0_71, %c0_72] : memref<8x128xf32, #tpu.memory_space<vmem>>, vector<8x128xf32>
      tpu.vector_store %arg5[%c0_71, %c0_72], %134 {strides = array<i32>} : memref<8x128xf32, #tpu.memory_space<vmem>>, vector<8x128xf32>,
    } else {
    }
    %c0 = arith.constant 0 : index
    %c0_1 = arith.constant 0 : index
    %3 = vector.load %arg3[%c0, %c0_1] : memref<128x128xf32, #tpu.memory_space<vmem>>, vector<128x128xf32>
    %c0_2 = arith.constant 0 : index
    %c0_3 = arith.constant 0 : index
    %4 = vector.load %arg5[%c0_2, %c0_3] : memref<8x128xf32, #tpu.memory_space<vmem>>, vector<8x128xf32>
    %c0_i32_4 = arith.constant 0 : i32
    %cst = arith.constant dense<0.000000e+00> : vector<8x128xf32>
    %5 = tpu.matmul %4, %3, %cst {dimension_numbers = #tpu.dot_dimension_numbers<[1], [0], [0], [1], [0, 0, 1, 1], [], []>} : vector<8x128xf32>, vector<128x128xf32>, vector<8x128xf32> -> vector<8x128xf32>
    %6 = arith.index_cast %c0_i32_4 : i32 to index
    %c0_5 = arith.constant 0 : index
    %c0_6 = arith.constant 0 : index
    %7 = vector.load %arg2[%6, %c0_5, %c0_6] : memref<8x8x128xf32, #tpu.memory_space<vmem>>, vector<1x8x128xf32>
    %8 = vector.shape_cast %7 : vector<1x8x128xf32> to vector<8x128xf32>
    %9 = arith.addf %5, %8 : vector<8x128xf32>
    %cst_7 = arith.constant 8.000000e-01 : f32
    %10 = vector.broadcast %cst_7 : f32 to vector<8x128xf32>
    %11 = arith.mulf %10, %4 : vector<8x128xf32>
    %cst_8 = arith.constant 0.000000e+00 : f32
    %12 = vector.broadcast %cst_8 : f32 to vector<8x128xf32>
    %13 = arith.maximumf %9, %12 : vector<8x128xf32>
    %cst_9 = arith.constant 2.000000e-01 : f32
    %14 = vector.broadcast %cst_9 : f32 to vector<8x128xf32>
    %15 = arith.mulf %14, %13 : vector<8x128xf32>
    %16 = arith.addf %11, %15 : vector<8x128xf32>
    %17 = arith.index_cast %c0_i32_4 : i32 to index
    %c0_10 = arith.constant 0 : index
    %c0_11 = arith.constant 0 : index
    %18 = vector.load %arg4[%17, %c0_10, %c0_11] : memref<8x8x128xf32, #tpu.memory_space<vmem>>, vector<1x8x128xf32>
    %19 = vector.shape_cast %18 : vector<1x8x128xf32> to vector<8x128xf32>
    %20 = vector.shape_cast %16 : vector<8x128xf32> to vector<1x8x128xf32>
    tpu.vector_store %arg4[%17, %c0_10, %c0_11], %20 {strides = array<i32>} : memref<8x8x128xf32, #tpu.memory_space<vmem>>, vector<1x8x128xf32>,
    %c1_i32 = arith.constant 1 : i32
    %cst_12 = arith.constant dense<0.000000e+00> : vector<8x128xf32>
    %21 = tpu.matmul %16, %3, %cst_12 {dimension_numbers = #tpu.dot_dimension_numbers<[1], [0], [0], [1], [0, 0, 1, 1], [], []>} : vector<8x128xf32>, vector<128x128xf32>, vector<8x128xf32> -> vector<8x128xf32>
    %22 = arith.index_cast %c1_i32 : i32 to index
    %c0_13 = arith.constant 0 : index
    %c0_14 = arith.constant 0 : index
    %23 = vector.load %arg2[%22, %c0_13, %c0_14] : memref<8x8x128xf32, #tpu.memory_space<vmem>>, vector<1x8x128xf32>
    %24 = vector.shape_cast %23 : vector<1x8x128xf32> to vector<8x128xf32>
    %25 = arith.addf %21, %24 : vector<8x128xf32>
    %cst_15 = arith.constant 8.000000e-01 : f32
    %26 = vector.broadcast %cst_15 : f32 to vector<8x128xf32>
    %27 = arith.mulf %26, %16 : vector<8x128xf32>
    %cst_16 = arith.constant 0.000000e+00 : f32
    %28 = vector.broadcast %cst_16 : f32 to vector<8x128xf32>
    %29 = arith.maximumf %25, %28 : vector<8x128xf32>
    %cst_17 = arith.constant 2.000000e-01 : f32
    %30 = vector.broadcast %cst_17 : f32 to vector<8x128xf32>
    %31 = arith.mulf %30, %29 : vector<8x128xf32>
    %32 = arith.addf %27, %31 : vector<8x128xf32>
    %33 = arith.index_cast %c1_i32 : i32 to index
    %c0_18 = arith.constant 0 : index
    %c0_19 = arith.constant 0 : index
    %34 = vector.load %arg4[%33, %c0_18, %c0_19] : memref<8x8x128xf32, #tpu.memory_space<vmem>>, vector<1x8x128xf32>
    %35 = vector.shape_cast %34 : vector<1x8x128xf32> to vector<8x128xf32>
    %36 = vector.shape_cast %32 : vector<8x128xf32> to vector<1x8x128xf32>
    tpu.vector_store %arg4[%33, %c0_18, %c0_19], %36 {strides = array<i32>} : memref<8x8x128xf32, #tpu.memory_space<vmem>>, vector<1x8x128xf32>,
    %c2_i32 = arith.constant 2 : i32
    %cst_20 = arith.constant dense<0.000000e+00> : vector<8x128xf32>
    %37 = tpu.matmul %32, %3, %cst_20 {dimension_numbers = #tpu.dot_dimension_numbers<[1], [0], [0], [1], [0, 0, 1, 1], [], []>} : vector<8x128xf32>, vector<128x128xf32>, vector<8x128xf32> -> vector<8x128xf32>
    %38 = arith.index_cast %c2_i32 : i32 to index
    %c0_21 = arith.constant 0 : index
    %c0_22 = arith.constant 0 : index
    %39 = vector.load %arg2[%38, %c0_21, %c0_22] : memref<8x8x128xf32, #tpu.memory_space<vmem>>, vector<1x8x128xf32>
    %40 = vector.shape_cast %39 : vector<1x8x128xf32> to vector<8x128xf32>
    %41 = arith.addf %37, %40 : vector<8x128xf32>
    %cst_23 = arith.constant 8.000000e-01 : f32
    %42 = vector.broadcast %cst_23 : f32 to vector<8x128xf32>
    %43 = arith.mulf %42, %32 : vector<8x128xf32>
    %cst_24 = arith.constant 0.000000e+00 : f32
    %44 = vector.broadcast %cst_24 : f32 to vector<8x128xf32>
    %45 = arith.maximumf %41, %44 : vector<8x128xf32>
    %cst_25 = arith.constant 2.000000e-01 : f32
    %46 = vector.broadcast %cst_25 : f32 to vector<8x128xf32>
    %47 = arith.mulf %46, %45 : vector<8x128xf32>
    %48 = arith.addf %43, %47 : vector<8x128xf32>
    %49 = arith.index_cast %c2_i32 : i32 to index
    %c0_26 = arith.constant 0 : index
    %c0_27 = arith.constant 0 : index
    %50 = vector.load %arg4[%49, %c0_26, %c0_27] : memref<8x8x128xf32, #tpu.memory_space<vmem>>, vector<1x8x128xf32>
    %51 = vector.shape_cast %50 : vector<1x8x128xf32> to vector<8x128xf32>
    %52 = vector.shape_cast %48 : vector<8x128xf32> to vector<1x8x128xf32>
    tpu.vector_store %arg4[%49, %c0_26, %c0_27], %52 {strides = array<i32>} : memref<8x8x128xf32, #tpu.memory_space<vmem>>, vector<1x8x128xf32>,
    %c3_i32 = arith.constant 3 : i32
    %cst_28 = arith.constant dense<0.000000e+00> : vector<8x128xf32>
    %53 = tpu.matmul %48, %3, %cst_28 {dimension_numbers = #tpu.dot_dimension_numbers<[1], [0], [0], [1], [0, 0, 1, 1], [], []>} : vector<8x128xf32>, vector<128x128xf32>, vector<8x128xf32> -> vector<8x128xf32>
    %54 = arith.index_cast %c3_i32 : i32 to index
    %c0_29 = arith.constant 0 : index
    %c0_30 = arith.constant 0 : index
    %55 = vector.load %arg2[%54, %c0_29, %c0_30] : memref<8x8x128xf32, #tpu.memory_space<vmem>>, vector<1x8x128xf32>
    %56 = vector.shape_cast %55 : vector<1x8x128xf32> to vector<8x128xf32>
    %57 = arith.addf %53, %56 : vector<8x128xf32>
    %cst_31 = arith.constant 8.000000e-01 : f32
    %58 = vector.broadcast %cst_31 : f32 to vector<8x128xf32>
    %59 = arith.mulf %58, %48 : vector<8x128xf32>
    %cst_32 = arith.constant 0.000000e+00 : f32
    %60 = vector.broadcast %cst_32 : f32 to vector<8x128xf32>
    %61 = arith.maximumf %57, %60 : vector<8x128xf32>
    %cst_33 = arith.constant 2.000000e-01 : f32
    %62 = vector.broadcast %cst_33 : f32 to vector<8x128xf32>
    %63 = arith.mulf %62, %61 : vector<8x128xf32>
    %64 = arith.addf %59, %63 : vector<8x128xf32>
    %65 = arith.index_cast %c3_i32 : i32 to index
    %c0_34 = arith.constant 0 : index
    %c0_35 = arith.constant 0 : index
    %66 = vector.load %arg4[%65, %c0_34, %c0_35] : memref<8x8x128xf32, #tpu.memory_space<vmem>>, vector<1x8x128xf32>
    %67 = vector.shape_cast %66 : vector<1x8x128xf32> to vector<8x128xf32>
    %68 = vector.shape_cast %64 : vector<8x128xf32> to vector<1x8x128xf32>
    tpu.vector_store %arg4[%65, %c0_34, %c0_35], %68 {strides = array<i32>} : memref<8x8x128xf32, #tpu.memory_space<vmem>>, vector<1x8x128xf32>,
    %c4_i32 = arith.constant 4 : i32
    %cst_36 = arith.constant dense<0.000000e+00> : vector<8x128xf32>
    %69 = tpu.matmul %64, %3, %cst_36 {dimension_numbers = #tpu.dot_dimension_numbers<[1], [0], [0], [1], [0, 0, 1, 1], [], []>} : vector<8x128xf32>, vector<128x128xf32>, vector<8x128xf32> -> vector<8x128xf32>
    %70 = arith.index_cast %c4_i32 : i32 to index
    %c0_37 = arith.constant 0 : index
    %c0_38 = arith.constant 0 : index
    %71 = vector.load %arg2[%70, %c0_37, %c0_38] : memref<8x8x128xf32, #tpu.memory_space<vmem>>, vector<1x8x128xf32>
    %72 = vector.shape_cast %71 : vector<1x8x128xf32> to vector<8x128xf32>
    %73 = arith.addf %69, %72 : vector<8x128xf32>
    %cst_39 = arith.constant 8.000000e-01 : f32
    %74 = vector.broadcast %cst_39 : f32 to vector<8x128xf32>
    %75 = arith.mulf %74, %64 : vector<8x128xf32>
    %cst_40 = arith.constant 0.000000e+00 : f32
    %76 = vector.broadcast %cst_40 : f32 to vector<8x128xf32>
    %77 = arith.maximumf %73, %76 : vector<8x128xf32>
    %cst_41 = arith.constant 2.000000e-01 : f32
    %78 = vector.broadcast %cst_41 : f32 to vector<8x128xf32>
    %79 = arith.mulf %78, %77 : vector<8x128xf32>
    %80 = arith.addf %75, %79 : vector<8x128xf32>
    %81 = arith.index_cast %c4_i32 : i32 to index
    %c0_42 = arith.constant 0 : index
    %c0_43 = arith.constant 0 : index
    %82 = vector.load %arg4[%81, %c0_42, %c0_43] : memref<8x8x128xf32, #tpu.memory_space<vmem>>, vector<1x8x128xf32>
    %83 = vector.shape_cast %82 : vector<1x8x128xf32> to vector<8x128xf32>
    %84 = vector.shape_cast %80 : vector<8x128xf32> to vector<1x8x128xf32>
    tpu.vector_store %arg4[%81, %c0_42, %c0_43], %84 {strides = array<i32>} : memref<8x8x128xf32, #tpu.memory_space<vmem>>, vector<1x8x128xf32>,
    %c5_i32 = arith.constant 5 : i32
    %cst_44 = arith.constant dense<0.000000e+00> : vector<8x128xf32>
    %85 = tpu.matmul %80, %3, %cst_44 {dimension_numbers = #tpu.dot_dimension_numbers<[1], [0], [0], [1], [0, 0, 1, 1], [], []>} : vector<8x128xf32>, vector<128x128xf32>, vector<8x128xf32> -> vector<8x128xf32>
    %86 = arith.index_cast %c5_i32 : i32 to index
    %c0_45 = arith.constant 0 : index
    %c0_46 = arith.constant 0 : index
    %87 = vector.load %arg2[%86, %c0_45, %c0_46] : memref<8x8x128xf32, #tpu.memory_space<vmem>>, vector<1x8x128xf32>
    %88 = vector.shape_cast %87 : vector<1x8x128xf32> to vector<8x128xf32>
    %89 = arith.addf %85, %88 : vector<8x128xf32>
    %cst_47 = arith.constant 8.000000e-01 : f32
    %90 = vector.broadcast %cst_47 : f32 to vector<8x128xf32>
    %91 = arith.mulf %90, %80 : vector<8x128xf32>
    %cst_48 = arith.constant 0.000000e+00 : f32
    %92 = vector.broadcast %cst_48 : f32 to vector<8x128xf32>
    %93 = arith.maximumf %89, %92 : vector<8x128xf32>
    %cst_49 = arith.constant 2.000000e-01 : f32
    %94 = vector.broadcast %cst_49 : f32 to vector<8x128xf32>
    %95 = arith.mulf %94, %93 : vector<8x128xf32>
    %96 = arith.addf %91, %95 : vector<8x128xf32>
    %97 = arith.index_cast %c5_i32 : i32 to index
    %c0_50 = arith.constant 0 : index
    %c0_51 = arith.constant 0 : index
    %98 = vector.load %arg4[%97, %c0_50, %c0_51] : memref<8x8x128xf32, #tpu.memory_space<vmem>>, vector<1x8x128xf32>
    %99 = vector.shape_cast %98 : vector<1x8x128xf32> to vector<8x128xf32>
    %100 = vector.shape_cast %96 : vector<8x128xf32> to vector<1x8x128xf32>
    tpu.vector_store %arg4[%97, %c0_50, %c0_51], %100 {strides = array<i32>} : memref<8x8x128xf32, #tpu.memory_space<vmem>>, vector<1x8x128xf32>,
    %c6_i32 = arith.constant 6 : i32
    %cst_52 = arith.constant dense<0.000000e+00> : vector<8x128xf32>
    %101 = tpu.matmul %96, %3, %cst_52 {dimension_numbers = #tpu.dot_dimension_numbers<[1], [0], [0], [1], [0, 0, 1, 1], [], []>} : vector<8x128xf32>, vector<128x128xf32>, vector<8x128xf32> -> vector<8x128xf32>
    %102 = arith.index_cast %c6_i32 : i32 to index
    %c0_53 = arith.constant 0 : index
    %c0_54 = arith.constant 0 : index
    %103 = vector.load %arg2[%102, %c0_53, %c0_54] : memref<8x8x128xf32, #tpu.memory_space<vmem>>, vector<1x8x128xf32>
    %104 = vector.shape_cast %103 : vector<1x8x128xf32> to vector<8x128xf32>
    %105 = arith.addf %101, %104 : vector<8x128xf32>
    %cst_55 = arith.constant 8.000000e-01 : f32
    %106 = vector.broadcast %cst_55 : f32 to vector<8x128xf32>
    %107 = arith.mulf %106, %96 : vector<8x128xf32>
    %cst_56 = arith.constant 0.000000e+00 : f32
    %108 = vector.broadcast %cst_56 : f32 to vector<8x128xf32>
    %109 = arith.maximumf %105, %108 : vector<8x128xf32>
    %cst_57 = arith.constant 2.000000e-01 : f32
    %110 = vector.broadcast %cst_57 : f32 to vector<8x128xf32>
    %111 = arith.mulf %110, %109 : vector<8x128xf32>
    %112 = arith.addf %107, %111 : vector<8x128xf32>
    %113 = arith.index_cast %c6_i32 : i32 to index
    %c0_58 = arith.constant 0 : index
    %c0_59 = arith.constant 0 : index
    %114 = vector.load %arg4[%113, %c0_58, %c0_59] : memref<8x8x128xf32, #tpu.memory_space<vmem>>, vector<1x8x128xf32>
    %115 = vector.shape_cast %114 : vector<1x8x128xf32> to vector<8x128xf32>
    %116 = vector.shape_cast %112 : vector<8x128xf32> to vector<1x8x128xf32>
    tpu.vector_store %arg4[%113, %c0_58, %c0_59], %116 {strides = array<i32>} : memref<8x8x128xf32, #tpu.memory_space<vmem>>, vector<1x8x128xf32>,
    %c7_i32 = arith.constant 7 : i32
    %cst_60 = arith.constant dense<0.000000e+00> : vector<8x128xf32>
    %117 = tpu.matmul %112, %3, %cst_60 {dimension_numbers = #tpu.dot_dimension_numbers<[1], [0], [0], [1], [0, 0, 1, 1], [], []>} : vector<8x128xf32>, vector<128x128xf32>, vector<8x128xf32> -> vector<8x128xf32>
    %118 = arith.index_cast %c7_i32 : i32 to index
    %c0_61 = arith.constant 0 : index
    %c0_62 = arith.constant 0 : index
    %119 = vector.load %arg2[%118, %c0_61, %c0_62] : memref<8x8x128xf32, #tpu.memory_space<vmem>>, vector<1x8x128xf32>
    %120 = vector.shape_cast %119 : vector<1x8x128xf32> to vector<8x128xf32>
    %121 = arith.addf %117, %120 : vector<8x128xf32>
    %cst_63 = arith.constant 8.000000e-01 : f32
    %122 = vector.broadcast %cst_63 : f32 to vector<8x128xf32>
    %123 = arith.mulf %122, %112 : vector<8x128xf32>
    %cst_64 = arith.constant 0.000000e+00 : f32
    %124 = vector.broadcast %cst_64 : f32 to vector<8x128xf32>
    %125 = arith.maximumf %121, %124 : vector<8x128xf32>
    %cst_65 = arith.constant 2.000000e-01 : f32
    %126 = vector.broadcast %cst_65 : f32 to vector<8x128xf32>
    %127 = arith.mulf %126, %125 : vector<8x128xf32>
    %128 = arith.addf %123, %127 : vector<8x128xf32>
    %129 = arith.index_cast %c7_i32 : i32 to index
    %c0_66 = arith.constant 0 : index
    %c0_67 = arith.constant 0 : index
    %130 = vector.load %arg4[%129, %c0_66, %c0_67] : memref<8x8x128xf32, #tpu.memory_space<vmem>>, vector<1x8x128xf32>
    %131 = vector.shape_cast %130 : vector<1x8x128xf32> to vector<8x128xf32>
    %132 = vector.shape_cast %128 : vector<8x128xf32> to vector<1x8x128xf32>
    tpu.vector_store %arg4[%129, %c0_66, %c0_67], %132 {strides = array<i32>} : memref<8x8x128xf32, #tpu.memory_space<vmem>>, vector<1x8x128xf32>,
    %c8_i32 = arith.constant 8 : i32
    %c0_68 = arith.constant 0 : index
    %c0_69 = arith.constant 0 : index
    %133 = vector.load %arg5[%c0_68, %c0_69] : memref<8x128xf32, #tpu.memory_space<vmem>>, vector<8x128xf32>
    tpu.vector_store %arg5[%c0_68, %c0_69], %128 {strides = array<i32>} : memref<8x128xf32, #tpu.memory_space<vmem>>, vector<8x128xf32>,
    return
  }
  func.func @transform_0(%arg0: i32, %arg1: i32) -> (i32, i32, i32) {
    %c0_i32 = arith.constant 0 : i32
    %c0_i32_0 = arith.constant 0 : i32
    return %arg1, %arg0, %c0_i32 : i32, i32, i32
  }
  func.func @transform_1(%arg0: i32, %arg1: i32) -> (i32, i32) {
    %c0_i32 = arith.constant 0 : i32
    %c0_i32_0 = arith.constant 0 : i32
    %c0_i32_1 = arith.constant 0 : i32
    return %c0_i32, %c0_i32_0 : i32, i32
  }
  func.func @transform_2(%arg0: i32, %arg1: i32) -> (i32, i32, i32) {
    %c0_i32 = arith.constant 0 : i32
    %c0_i32_0 = arith.constant 0 : i32
    return %arg1, %arg0, %c0_i32 : i32, i32, i32
  }
}

</mosaic_0001>

<llo_original>
// kernel: tpu_custom_call.1
$region0: #{tpu_custom_call.1}
  #allocation0 [shape = 'u32[]', space=smem, size = 0x4, offset = 0x4, fixed_abs, tag = 'smem constant byte address 0x4 - core index']
  #allocation1 [shape = 'u32[144,128]{1,0:T(1,128)}', space=vmem, size = 0x12000, scoped, tag = 'internal scratch']
  #allocation2 [shape = 'f32[8,128]{1,0:T(8,128)}', space=vmem, size = 0x1000, scoped, tag = 'scratch operand']
  %s0 = inlined_call_operand.hbm [shape: f32[16,8,128], index: 0, kind: input, shape index: {}]
  %s1 = inlined_call_operand.hbm [shape: f32[128,128], index: 1, kind: input, shape index: {}]
  %s2 = inlined_call_operand.hbm [shape: f32[16,8,128], index: 2, kind: output, shape index: {}]
  %s3 = sld [smem:[#allocation0]]
  $region53: #{tpu_custom_call.1} parent=0
    _
  %s5 = ssub.s32 1, %s3
  %s6 = scalar_select 0, %s5, %s3
  $region1: #{tpu_custom_call.1} parent=0
    #allocation3 [shape = 'u8[65536]{0}', space=vmem, size = 0x10000, scoped, tag = 'input window, operand 0']
    #allocation4 [shape = 's32[2]{0}', space=sflag, size = 0x8, scoped, tag = 'scoped memory for tpu_custom_call.1']
    #allocation5 [shape = 's32[2]{0}', space=sflag, size = 0x8, scoped, tag = 'scoped memory for tpu_custom_call.1']
    #allocation6 [shape = 'u8[65536]{0}', space=vmem, size = 0x10000, scoped, tag = 'input window, operand 1, single buffered']
    #allocation7 [shape = 's32[1]{0}', space=sflag, size = 0x4, scoped, tag = 'scoped memory for tpu_custom_call.1']
    #allocation8 [shape = 'u8[65536]{0}', space=vmem, size = 0x10000, scoped, tag = 'output window, operand 0']
    %7 = vsyncpa [#allocation4], 0
    %s8 = scalar_lea.sflag [#allocation4], 1
    %9 = vsyncpa %s8, 0
    %10 = vsyncpa [#allocation7], 0
    %11 = vsyncpa [#allocation5], 0
    %s12 = scalar_lea.sflag [#allocation5], 1
    %13 = vsyncpa %s12, 0
    loop: start=0, step=1, limit=4
    $region2: #{tpu_custom_call.1} parent=1 // loop_pre_header
      _
    $region3: #{tpu_custom_call.1} parent=1 // loop_header
      %s15 = sphi 0, %s19
      %p16 = scmp.ge.s32.totalorder %s15, 4
      %s22 = sphi 0, %s34
      %s23 = sphi 0, %s30
      %s24 = sphi 0, %s22
      %s25 = sphi 0, %s23
      %s26 = sphi 0, %s24
      %s27 = sphi 0, %s25
      %s39 = sphi 0, %s41
      %s42 = sphi 0, %s39
      %s43 = sphi 0, %s42
      %s59 = sphi 0, %s43
      %s63 = sphi 0, %s63
      %s65 = sphi 0, %s63
      %s66 = sphi 0, %s65
      %s80 = sphi 0, %s66
      %s88 = sphi 0, %s90
      %s91 = sphi 0, %s88
      %s92 = sphi 0, %s91
      %s108 = sphi 0, %s92
    $region4: #{tpu_custom_call.1} parent=1 // loop_header_branch
      %18 = sbr.rel (%p16) target = $region8
    $region5: #{tpu_custom_call.1} parent=1 // loop_body
      %s20 = ssub.s32 %s15, 1
      %s21 = ssub.s32 %s15, 2
      %s28 = sadd.s32 1, %s23
      %p29 = scmp.ge.s32.totalorder %s28, 2
      %s30 = scalar_select %p29, 0, %s28
      %s31 = sadd.s32 1, %s22
      %s32 = scalar_select %p29, %s31, %s22
      %p33 = scmp.ge.s32.totalorder %s32, 1
      %s34 = scalar_select %p33, 0, %s32
      %s35 = ssub.s32 %s23, %s30
      %s36 = ssub.s32 %s22, %s34
      %s37 = sor.u32 %s35, %s36
      %p38 = scmp.eq.s32.totalorder %s37, 0
      %s40 = sadd.s32 %s39, 1
      %s41 = scalar_select %p38, %s39, %s40
      %p44 = pneg %p38
      %p45 = scmp.eq.s32.totalorder %s15, 1
      %p46 = por %p44, %p45
      %p47 = scmp.ne.s32.totalorder %s39, %s42
      %p48 = scmp.eq.s32.totalorder %s15, 0
      %p49 = por %p47, %p48
      %p50 = scmp.ne.s32.totalorder %s39, %s42
      %p51 = scmp.eq.s32.totalorder %s20, 1
      %p52 = por %p50, %p51
      %p53 = scmp.ne.s32.totalorder %s42, %s43
      %p54 = scmp.eq.s32.totalorder %s20, 0
      %p55 = por %p53, %p54
      %p56 = scmp.ne.s32.totalorder %s42, %s43
      %p57 = scmp.eq.s32.totalorder %s21, 1
      %p58 = por %p56, %p57
      %p60 = scmp.ne.s32.totalorder %s43, %s59
      %p61 = scmp.eq.s32.totalorder %s21, 0
      %p62 = por %p60, %p61
      %s64 = sadd.s32 %s63, 1
      %p67 = scmp.eq.s32.totalorder %s15, 1
      %p68 = scmp.ne.s32.totalorder %s63, %s65
      %p69 = scmp.eq.s32.totalorder %s15, 0
      %p70 = por %p68, %p69
      %p71 = scmp.ne.s32.totalorder %s63, %s65
      %p72 = scmp.eq.s32.totalorder %s20, 1
      %p73 = por %p71, %p72
      %p74 = scmp.ne.s32.totalorder %s65, %s66
      %p75 = scmp.eq.s32.totalorder %s20, 0
      %p76 = por %p74, %p75
      %p77 = scmp.ne.s32.totalorder %s65, %s66
      %p78 = scmp.eq.s32.totalorder %s21, 1
      %p79 = por %p77, %p78
      %p81 = scmp.ne.s32.totalorder %s66, %s80
      %p82 = scmp.eq.s32.totalorder %s21, 0
      %p83 = por %p81, %p82
      %s84 = ssub.s32 %s23, %s30
      %s85 = ssub.s32 %s22, %s34
      %s86 = sor.u32 %s84, %s85
      %p87 = scmp.eq.s32.totalorder %s86, 0
      %s89 = sadd.s32 %s88, 1
      %s90 = scalar_select %p87, %s88, %s89
      %p93 = pneg %p87
      %p94 = scmp.eq.s32.totalorder %s15, 1
      %p95 = por %p93, %p94
      %p96 = scmp.ne.s32.totalorder %s88, %s91
      %p97 = scmp.eq.s32.totalorder %s15, 0
      %p98 = por %p96, %p97
      %p99 = scmp.ne.s32.totalorder %s88, %s91
      %p100 = scmp.eq.s32.totalorder %s20, 1
      %p101 = por %p99, %p100
      %p102 = scmp.ne.s32.totalorder %s91, %s92
      %p103 = scmp.eq.s32.totalorder %s20, 0
      %p104 = por %p102, %p103
      %p105 = scmp.ne.s32.totalorder %s91, %s92
      %p106 = scmp.eq.s32.totalorder %s21, 1
      %p107 = por %p105, %p106
      %p109 = scmp.ne.s32.totalorder %s92, %s108
      %p110 = scmp.eq.s32.totalorder %s21, 0
      %p111 = por %p109, %p110
      %p112 = scmp.le.s32.totalorder 1, %s15
      %p113 = scmp.lt.s32.totalorder %s15, 3
      %p114 = pnand %p112, %p113
      %p115 = pneg %p114
      // Predicated region
      $region9: #{tpu_custom_call.1} parent=5 // pred_check
        _
      $region10: #{tpu_custom_call.1} parent=5 // pred_check_branch
        %117 = sbr.rel (%p114) target = $region12
      $region11: #{tpu_custom_call.1} parent=5 // pred_region
        %s118 = ssub.s32 %s15, 1
        // Predicated region
        $region13: #{tpu_custom_call.1} parent=11 // pred_check
          %p119 = pneg %p76
        $region14: #{tpu_custom_call.1} parent=11 // pred_check_branch
          %121 = sbr.rel (%p119) target = $region16
        $region15: #{tpu_custom_call.1} parent=11 // pred_region
          %s123 = ssub.s32 2048, 2048
          %124 = vsyncadd [#allocation7], %s123
          %s125 = sshll.u32 [#allocation6], 4
          %s126 = int_to_ptr.vmem [resolvable:$true] %s125
          %131 = dma.hbm_to_vmem [thread:$0]  %s1, 2048, %s126, [#allocation7], 128, 128, 8
        $region16: #{tpu_custom_call.1} parent=11 // pred_fallthru
          _
      $region12: #{tpu_custom_call.1} parent=5 // pred_fallthru
        _
      %p132 = scmp.lt.s32.totalorder %s15, 2
      // Predicated region
      $region17: #{tpu_custom_call.1} parent=5 // pred_check
        %p133 = pneg %p132
      $region18: #{tpu_custom_call.1} parent=5 // pred_check_branch
        %135 = sbr.rel (%p133) target = $region20
      $region19: #{tpu_custom_call.1} parent=5 // pred_region
        // Predicated region
        $region21: #{tpu_custom_call.1} parent=19 // pred_check
          %p136 = pneg %p49
        $region22: #{tpu_custom_call.1} parent=19 // pred_check_branch
          %138 = sbr.rel (%p136) target = $region24
        $region23: #{tpu_custom_call.1} parent=19 // pred_region
          %s139 = sand.u32 %s39, 1
          %s140 = scalar_lea.sflag [#allocation4], %s139
          %s141 = sand.u32 %s39, 1
          %s142 = smul.addr %s141, 64
          %s143 = scalar_lea.vmem [#allocation3], %s142
          %s144 = smul.u32 8, %s23
          %s146 = ssub.s32 1024, 1024
          %147 = vsyncadd %s140, %s146
          %s148 = sadd.s32 %s22, %s144
          %s149 = smul.addr %s148, 128
          %s150 = scalar_lea.hbm %s0, %s149
          %s151 = sshll.u32 %s143, 4
          %s152 = int_to_ptr.vmem [resolvable:$true] %s151
          %157 = dma.hbm_to_vmem [thread:$0]  %s150, 1024, %s152, %s140, 128, 128, 8
        $region24: #{tpu_custom_call.1} parent=19 // pred_fallthru
          _
      $region20: #{tpu_custom_call.1} parent=5 // pred_fallthru
        _
      %p158 = scmp.le.s32.totalorder 1, %s15
      %p159 = scmp.lt.s32.totalorder %s15, 3
      %p160 = pnand %p158, %p159
      %p161 = pneg %p160
      // Predicated region
      $region25: #{tpu_custom_call.1} parent=5 // pred_check
        _
      $region26: #{tpu_custom_call.1} parent=5 // pred_check_branch
        %163 = sbr.rel (%p160) target = $region28
      $region27: #{tpu_custom_call.1} parent=5 // pred_region
        %s164 = ssub.s32 %s15, 1
        %s165 = sand.u32 %s42, 1
        %s166 = scalar_lea.sflag [#allocation4], %s165
        %s167 = sand.u32 %s42, 1
        %s168 = smul.addr %s167, 64
        %s169 = scalar_lea.vmem [#allocation3], %s168
        // Predicated region
        $region29: #{tpu_custom_call.1} parent=27 // pred_check
          %p170 = pneg %p55
        $region30: #{tpu_custom_call.1} parent=27 // pred_check_branch
          %172 = sbr.rel (%p170) target = $region32
        $region31: #{tpu_custom_call.1} parent=27 // pred_region
          %173 = dma.done %s166, 1024
        $region32: #{tpu_custom_call.1} parent=27 // pred_fallthru
          _
        // Predicated region
        $region33: #{tpu_custom_call.1} parent=27 // pred_check
          %p174 = pneg %p76
        $region34: #{tpu_custom_call.1} parent=27 // pred_check_branch
          %176 = sbr.rel (%p174) target = $region36
        $region35: #{tpu_custom_call.1} parent=27 // pred_region
          %177 = dma.done [#allocation7], 2048
        $region36: #{tpu_custom_call.1} parent=27 // pred_fallthru
          _
        %s178 = sand.u32 %s42, 1
        %s179 = scalar_lea.sflag [#allocation4], %s178
        %s180 = sand.u32 %s42, 1
        %s181 = smul.addr %s180, 64
        %s182 = scalar_lea.vmem [#allocation3], %s181
        %p183 = pneg %p55
        %p184 = pneg %p52
        %p185 = pneg %p76
        %p186 = pneg %p73
        %p187 = pneg %p104
        %p188 = pneg %p101
        %s189 = sand.u32 %s91, 1
        %s190 = scalar_lea.sflag [#allocation5], %s189
        %s191 = sand.u32 %s91, 1
        %s192 = smul.addr %s191, 64
        %s193 = scalar_lea.vmem [#allocation8], %s192
        %s194 = smul.u32 8, %s25
        %s195 = smul.u32 8, %s25
        %p196 = scmp.eq.s32.totalorder %s25, 0
        // Predicated region
        $region37: #{tpu_custom_call.1} parent=27 // pred_check
          %p197 = pneg %p196
        $region38: #{tpu_custom_call.1} parent=27 // pred_check_branch
          %199 = sbr.rel (%p197) target = $region40
        $region39: #{tpu_custom_call.1} parent=27 // pred_region
          %200 = vst [vmem:[#allocation2] sm:$0xff] 0.0
        $region40: #{tpu_custom_call.1} parent=27 // pred_fallthru
          _
        %v201 = vld [vmem:[#allocation6] sm:$0xff]
        %v202 = vld [vmem:[#allocation6 + $0x8] sm:$0xff]
        %v203 = vld [vmem:[#allocation6 + $0x10] sm:$0xff]
        %v204 = vld [vmem:[#allocation6 + $0x18] sm:$0xff]
        %v205 = vld [vmem:[#allocation6 + $0x20] sm:$0xff]
        %v206 = vld [vmem:[#allocation6 + $0x28] sm:$0xff]
        %v207 = vld [vmem:[#allocation6 + $0x30] sm:$0xff]
        %v208 = vld [vmem:[#allocation6 + $0x38] sm:$0xff]
        %v209 = vld [vmem:[#allocation6 + $0x40] sm:$0xff]
        %v210 = vld [vmem:[#allocation6 + $0x48] sm:$0xff]
        %v211 = vld [vmem:[#allocation6 + $0x50] sm:$0xff]
        %v212 = vld [vmem:[#allocation6 + $0x58] sm:$0xff]
        %v213 = vld [vmem:[#allocation6 + $0x60] sm:$0xff]
        %v214 = vld [vmem:[#allocation6 + $0x68] sm:$0xff]
        %v215 = vld [vmem:[#allocation6 + $0x70] sm:$0xff]
        %v216 = vld [vmem:[#allocation6 + $0x78] sm:$0xff]
        %v217 = vld [vmem:[#allocation2] sm:$0xff]
        %v218 = vld [vmem:[%s169] sm:$0xff]
        %219 = vmatprep.subr.mxu0 0.0
        %220 = vmatpush1.msra.mxu0 %v216
        %221 = vmatprep.subr.mxu0 0.0
        %222 = vmatpush1.msra.mxu0 %v215
        %223 = vmatprep.subr.mxu0 0.0
        %224 = vmatpush1.msra.mxu0 %v214
        %225 = vmatprep.subr.mxu0 0.0
        %226 = vmatpush1.msra.mxu0 %v213
        %227 = vmatprep.subr.mxu0 0.0
        %228 = vmatpush1.msra.mxu0 %v212
        %229 = vmatprep.subr.mxu0 0.0
        %230 = vmatpush1.msra.mxu0 %v211
        %231 = vmatprep.subr.mxu0 0.0
        %232 = vmatpush1.msra.mxu0 %v210
        %233 = vmatprep.subr.mxu0 0.0
        %234 = vmatpush1.msra.mxu0 %v209
        %235 = vmatprep.subr.mxu0 0.0
        %236 = vmatpush1.msra.mxu0 %v208
        %237 = vmatprep.subr.mxu0 0.0
        %238 = vmatpush1.msra.mxu0 %v207
        %239 = vmatprep.subr.mxu0 0.0
        %240 = vmatpush1.msra.mxu0 %v206
        %241 = vmatprep.subr.mxu0 0.0
        %242 = vmatpush1.msra.mxu0 %v205
        %243 = vmatprep.subr.mxu0 0.0
        %244 = vmatpush1.msra.mxu0 %v204
        %245 = vmatprep.subr.mxu0 0.0
        %246 = vmatpush1.msra.mxu0 %v203
        %247 = vmatprep.subr.mxu0 0.0
        %248 = vmatpush1.msra.mxu0 %v202
        %249 = vmatprep.subr.mxu0 0.0
        %250 = vmatpush1.msra.mxu0 %v201
        %251 = vmatprep.subr.mxu0 0.0
        %252 = vmatpush2.msra.mxu0 0.0
        %253 = vmatprep.subr.mxu0 0.0
        %254 = vmatpush2.msra.mxu0 0.0
        %255 = vmatprep.subr.mxu0 0.0
        %256 = vmatpush2.msra.mxu0 0.0
        %257 = vmatprep.subr.mxu0 0.0
        %258 = vmatpush2.msra.mxu0 0.0
        %259 = vmatprep.subr.mxu0 0.0
        %260 = vmatpush2.msra.mxu0 0.0
        %261 = vmatprep.subr.mxu0 0.0
        %262 = vmatpush2.msra.mxu0 0.0
        %263 = vmatprep.subr.mxu0 0.0
        %264 = vmatpush2.msra.mxu0 0.0
        %265 = vmatprep.subr.mxu0 0.0
        %266 = vmatpush2.msra.mxu0 0.0
        %267 = vmatprep.subr.mxu0 0.0
        %268 = vmatpush2.msra.mxu0 0.0
        %269 = vmatprep.subr.mxu0 0.0
        %270 = vmatpush2.msra.mxu0 0.0
        %271 = vmatprep.subr.mxu0 0.0
        %272 = vmatpush2.msra.mxu0 0.0
        %273 = vmatprep.subr.mxu0 0.0
        %274 = vmatpush2.msra.mxu0 0.0
        %275 = vmatprep.subr.mxu0 0.0
        %276 = vmatpush2.msra.mxu0 0.0
        %277 = vmatprep.subr.mxu0 0.0
        %278 = vmatpush2.msra.mxu0 0.0
        %279 = vmatprep.subr.mxu0 0.0
        %280 = vmatpush2.msra.mxu0 0.0
        %281 = vmatprep.subr.mxu0 0.0
        %282 = vmatpush2.msra.mxu0 0.0
        %283 = vmatprep.mubr.f32.mxu0 0.0
        %284 = vmatmul.mubr.f32.gmra.mxu0 %v217
        %v285 = vpop.f32.mrf.mxu0
        %v286 = vadd.f32 %v218, %v285
        %v287 = vpop.f32.mrf.mxu0
        %288 = vdwg.mxu0
        %v289 = vmul.f32 %v217, 0.8
        %v290 = vmax.f32 %v286, 0.0
        %v291 = vmul.f32 %v290, 0.2
        %v292 = vadd.f32 %v289, %v291
        %293 = vst [vmem:[%s193] sm:$0xff] %v292
        %s294 = scalar_lea.vmem %s169, 8 [#allocation3]
        %v295 = vld [vmem:[%s294] sm:$0xff]
        %296 = vmatprep.subr.mxu0 0.0
        %297 = vmatpush1.msra.mxu0 %v216
        %298 = vmatprep.subr.mxu0 0.0
        %299 = vmatpush1.msra.mxu0 %v215
        %300 = vmatprep.subr.mxu0 0.0
        %301 = vmatpush1.msra.mxu0 %v214
        %302 = vmatprep.subr.mxu0 0.0
        %303 = vmatpush1.msra.mxu0 %v213
        %304 = vmatprep.subr.mxu0 0.0
        %305 = vmatpush1.msra.mxu0 %v212
        %306 = vmatprep.subr.mxu0 0.0
        %307 = vmatpush1.msra.mxu0 %v211
        %308 = vmatprep.subr.mxu0 0.0
        %309 = vmatpush1.msra.mxu0 %v210
        %310 = vmatprep.subr.mxu0 0.0
        %311 = vmatpush1.msra.mxu0 %v209
        %312 = vmatprep.subr.mxu0 0.0
        %313 = vmatpush1.msra.mxu0 %v208
        %314 = vmatprep.subr.mxu0 0.0
        %315 = vmatpush1.msra.mxu0 %v207
        %316 = vmatprep.subr.mxu0 0.0
        %317 = vmatpush1.msra.mxu0 %v206
        %318 = vmatprep.subr.mxu0 0.0
        %319 = vmatpush1.msra.mxu0 %v205
        %320 = vmatprep.subr.mxu0 0.0
        %321 = vmatpush1.msra.mxu0 %v204
        %322 = vmatprep.subr.mxu0 0.0
        %323 = vmatpush1.msra.mxu0 %v203
        %324 = vmatprep.subr.mxu0 0.0
        %325 = vmatpush1.msra.mxu0 %v202
        %326 = vmatprep.subr.mxu0 0.0
        %327 = vmatpush1.msra.mxu0 %v201
        %328 = vmatprep.subr.mxu0 0.0
        %329 = vmatpush2.msra.mxu0 0.0
        %330 = vmatprep.subr.mxu0 0.0
        %331 = vmatpush2.msra.mxu0 0.0
        %332 = vmatprep.subr.mxu0 0.0
        %333 = vmatpush2.msra.mxu0 0.0
        %334 = vmatprep.subr.mxu0 0.0
        %335 = vmatpush2.msra.mxu0 0.0
        %336 = vmatprep.subr.mxu0 0.0
        %337 = vmatpush2.msra.mxu0 0.0
        %338 = vmatprep.subr.mxu0 0.0
        %339 = vmatpush2.msra.mxu0 0.0
        %340 = vmatprep.subr.mxu0 0.0
        %341 = vmatpush2.msra.mxu0 0.0
        %342 = vmatprep.subr.mxu0 0.0
        %343 = vmatpush2.msra.mxu0 0.0
        %344 = vmatprep.subr.mxu0 0.0
        %345 = vmatpush2.msra.mxu0 0.0
        %346 = vmatprep.subr.mxu0 0.0
        %347 = vmatpush2.msra.mxu0 0.0
        %348 = vmatprep.subr.mxu0 0.0
        %349 = vmatpush2.msra.mxu0 0.0
        %350 = vmatprep.subr.mxu0 0.0
        %351 = vmatpush2.msra.mxu0 0.0
        %352 = vmatprep.subr.mxu0 0.0
        %353 = vmatpush2.msra.mxu0 0.0
        %354 = vmatprep.subr.mxu0 0.0
        %355 = vmatpush2.msra.mxu0 0.0
        %356 = vmatprep.subr.mxu0 0.0
        %357 = vmatpush2.msra.mxu0 0.0
        %358 = vmatprep.subr.mxu0 0.0
        %359 = vmatpush2.msra.mxu0 0.0
        %360 = vmatprep.mubr.f32.mxu0 0.0
        %361 = vmatmul.mubr.f32.gmra.mxu0 %v292
        %v362 = vpop.f32.mrf.mxu0
        %v363 = vadd.f32 %v295, %v362
        %v364 = vpop.f32.mrf.mxu0
        %365 = vdwg.mxu0
        %v366 = vmul.f32 %v292, 0.8
        %v367 = vmax.f32 %v363, 0.0
        %v368 = vmul.f32 %v367, 0.2
        %v369 = vadd.f32 %v366, %v368
        %s370 = scalar_lea.vmem %s193, 8 [#allocation8]
        %371 = vst [vmem:[%s370] sm:$0xff] %v369
        %s372 = scalar_lea.vmem %s169, 16 [#allocation3]
        %v373 = vld [vmem:[%s372] sm:$0xff]
        %374 = vmatprep.subr.mxu0 0.0
        %375 = vmatpush1.msra.mxu0 %v216
        %376 = vmatprep.subr.mxu0 0.0
        %377 = vmatpush1.msra.mxu0 %v215
        %378 = vmatprep.subr.mxu0 0.0
        %379 = vmatpush1.msra.mxu0 %v214
        %380 = vmatprep.subr.mxu0 0.0
        %381 = vmatpush1.msra.mxu0 %v213
        %382 = vmatprep.subr.mxu0 0.0
        %383 = vmatpush1.msra.mxu0 %v212
        %384 = vmatprep.subr.mxu0 0.0
        %385 = vmatpush1.msra.mxu0 %v211
        %386 = vmatprep.subr.mxu0 0.0
        %387 = vmatpush1.msra.mxu0 %v210
        %388 = vmatprep.subr.mxu0 0.0
        %389 = vmatpush1.msra.mxu0 %v209
        %390 = vmatprep.subr.mxu0 0.0
        %391 = vmatpush1.msra.mxu0 %v208
        %392 = vmatprep.subr.mxu0 0.0
        %393 = vmatpush1.msra.mxu0 %v207
        %394 = vmatprep.subr.mxu0 0.0
        %395 = vmatpush1.msra.mxu0 %v206
        %396 = vmatprep.subr.mxu0 0.0
        %397 = vmatpush1.msra.mxu0 %v205
        %398 = vmatprep.subr.mxu0 0.0
        %399 = vmatpush1.msra.mxu0 %v204
        %400 = vmatprep.subr.mxu0 0.0
        %401 = vmatpush1.msra.mxu0 %v203
        %402 = vmatprep.subr.mxu0 0.0
        %403 = vmatpush1.msra.mxu0 %v202
        %404 = vmatprep.subr.mxu0 0.0
        %405 = vmatpush1.msra.mxu0 %v201
        %406 = vmatprep.subr.mxu0 0.0
        %407 = vmatpush2.msra.mxu0 0.0
        %408 = vmatprep.subr.mxu0 0.0
        %409 = vmatpush2.msra.mxu0 0.0
        %410 = vmatprep.subr.mxu0 0.0
        %411 = vmatpush2.msra.mxu0 0.0
        %412 = vmatprep.subr.mxu0 0.0
        %413 = vmatpush2.msra.mxu0 0.0
        %414 = vmatprep.subr.mxu0 0.0
        %415 = vmatpush2.msra.mxu0 0.0
        %416 = vmatprep.subr.mxu0 0.0
        %417 = vmatpush2.msra.mxu0 0.0
        %418 = vmatprep.subr.mxu0 0.0
        %419 = vmatpush2.msra.mxu0 0.0
        %420 = vmatprep.subr.mxu0 0.0
        %421 = vmatpush2.msra.mxu0 0.0
        %422 = vmatprep.subr.mxu0 0.0
        %423 = vmatpush2.msra.mxu0 0.0
        %424 = vmatprep.subr.mxu0 0.0
        %425 = vmatpush2.msra.mxu0 0.0
        %426 = vmatprep.subr.mxu0 0.0
        %427 = vmatpush2.msra.mxu0 0.0
        %428 = vmatprep.subr.mxu0 0.0
        %429 = vmatpush2.msra.mxu0 0.0
        %430 = vmatprep.subr.mxu0 0.0
        %431 = vmatpush2.msra.mxu0 0.0
        %432 = vmatprep.subr.mxu0 0.0
        %433 = vmatpush2.msra.mxu0 0.0
        %434 = vmatprep.subr.mxu0 0.0
        %435 = vmatpush2.msra.mxu0 0.0
        %436 = vmatprep.subr.mxu0 0.0
        %437 = vmatpush2.msra.mxu0 0.0
        %438 = vmatprep.mubr.f32.mxu0 0.0
        %439 = vmatmul.mubr.f32.gmra.mxu0 %v369
        %v440 = vpop.f32.mrf.mxu0
        %v441 = vadd.f32 %v373, %v440
        %v442 = vpop.f32.mrf.mxu0
        %443 = vdwg.mxu0
        %v444 = vmul.f32 %v369, 0.8
        %v445 = vmax.f32 %v441, 0.0
        %v446 = vmul.f32 %v445, 0.2
        %v447 = vadd.f32 %v444, %v446
        %s448 = scalar_lea.vmem %s193, 16 [#allocation8]
        %449 = vst [vmem:[%s448] sm:$0xff] %v447
        %s450 = scalar_lea.vmem %s169, 24 [#allocation3]
        %v451 = vld [vmem:[%s450] sm:$0xff]
        %452 = vmatprep.subr.mxu0 0.0
        %453 = vmatpush1.msra.mxu0 %v216
        %454 = vmatprep.subr.mxu0 0.0
        %455 = vmatpush1.msra.mxu0 %v215
        %456 = vmatprep.subr.mxu0 0.0
        %457 = vmatpush1.msra.mxu0 %v214
        %458 = vmatprep.subr.mxu0 0.0
        %459 = vmatpush1.msra.mxu0 %v213
        %460 = vmatprep.subr.mxu0 0.0
        %461 = vmatpush1.msra.mxu0 %v212
        %462 = vmatprep.subr.mxu0 0.0
        %463 = vmatpush1.msra.mxu0 %v211
        %464 = vmatprep.subr.mxu0 0.0
        %465 = vmatpush1.msra.mxu0 %v210
        %466 = vmatprep.subr.mxu0 0.0
        %467 = vmatpush1.msra.mxu0 %v209
        %468 = vmatprep.subr.mxu0 0.0
        %469 = vmatpush1.msra.mxu0 %v208
        %470 = vmatprep.subr.mxu0 0.0
        %471 = vmatpush1.msra.mxu0 %v207
        %472 = vmatprep.subr.mxu0 0.0
        %473 = vmatpush1.msra.mxu0 %v206
        %474 = vmatprep.subr.mxu0 0.0
        %475 = vmatpush1.msra.mxu0 %v205
        %476 = vmatprep.subr.mxu0 0.0
        %477 = vmatpush1.msra.mxu0 %v204
        %478 = vmatprep.subr.mxu0 0.0
        %479 = vmatpush1.msra.mxu0 %v203
        %480 = vmatprep.subr.mxu0 0.0
        %481 = vmatpush1.msra.mxu0 %v202
        %482 = vmatprep.subr.mxu0 0.0
        %483 = vmatpush1.msra.mxu0 %v201
        %484 = vmatprep.subr.mxu0 0.0
        %485 = vmatpush2.msra.mxu0 0.0
        %486 = vmatprep.subr.mxu0 0.0
        %487 = vmatpush2.msra.mxu0 0.0
        %488 = vmatprep.subr.mxu0 0.0
        %489 = vmatpush2.msra.mxu0 0.0
        %490 = vmatprep.subr.mxu0 0.0
        %491 = vmatpush2.msra.mxu0 0.0
        %492 = vmatprep.subr.mxu0 0.0
        %493 = vmatpush2.msra.mxu0 0.0
        %494 = vmatprep.subr.mxu0 0.0
        %495 = vmatpush2.msra.mxu0 0.0
        %496 = vmatprep.subr.mxu0 0.0
        %497 = vmatpush2.msra.mxu0 0.0
        %498 = vmatprep.subr.mxu0 0.0
        %499 = vmatpush2.msra.mxu0 0.0
        %500 = vmatprep.subr.mxu0 0.0
        %501 = vmatpush2.msra.mxu0 0.0
        %502 = vmatprep.subr.mxu0 0.0
        %503 = vmatpush2.msra.mxu0 0.0
        %504 = vmatprep.subr.mxu0 0.0
        %505 = vmatpush2.msra.mxu0 0.0
        %506 = vmatprep.subr.mxu0 0.0
        %507 = vmatpush2.msra.mxu0 0.0
        %508 = vmatprep.subr.mxu0 0.0
        %509 = vmatpush2.msra.mxu0 0.0
        %510 = vmatprep.subr.mxu0 0.0
        %511 = vmatpush2.msra.mxu0 0.0
        %512 = vmatprep.subr.mxu0 0.0
        %513 = vmatpush2.msra.mxu0 0.0
        %514 = vmatprep.subr.mxu0 0.0
        %515 = vmatpush2.msra.mxu0 0.0
        %516 = vmatprep.mubr.f32.mxu0 0.0
        %517 = vmatmul.mubr.f32.gmra.mxu0 %v447
        %v518 = vpop.f32.mrf.mxu0
        %v519 = vadd.f32 %v451, %v518
        %v520 = vpop.f32.mrf.mxu0
        %521 = vdwg.mxu0
        %v522 = vmul.f32 %v447, 0.8
        %v523 = vmax.f32 %v519, 0.0
        %v524 = vmul.f32 %v523, 0.2
        %v525 = vadd.f32 %v522, %v524
        %s526 = scalar_lea.vmem %s193, 24 [#allocation8]
        %527 = vst [vmem:[%s526] sm:$0xff] %v525
        %s528 = scalar_lea.vmem %s169, 32 [#allocation3]
        %v529 = vld [vmem:[%s528] sm:$0xff]
        %530 = vmatprep.subr.mxu0 0.0
        %531 = vmatpush1.msra.mxu0 %v216
        %532 = vmatprep.subr.mxu0 0.0
        %533 = vmatpush1.msra.mxu0 %v215
        %534 = vmatprep.subr.mxu0 0.0
        %535 = vmatpush1.msra.mxu0 %v214
        %536 = vmatprep.subr.mxu0 0.0
        %537 = vmatpush1.msra.mxu0 %v213
        %538 = vmatprep.subr.mxu0 0.0
        %539 = vmatpush1.msra.mxu0 %v212
        %540 = vmatprep.subr.mxu0 0.0
        %541 = vmatpush1.msra.mxu0 %v211
        %542 = vmatprep.subr.mxu0 0.0
        %543 = vmatpush1.msra.mxu0 %v210
        %544 = vmatprep.subr.mxu0 0.0
        %545 = vmatpush1.msra.mxu0 %v209
        %546 = vmatprep.subr.mxu0 0.0
        %547 = vmatpush1.msra.mxu0 %v208
        %548 = vmatprep.subr.mxu0 0.0
        %549 = vmatpush1.msra.mxu0 %v207
        %550 = vmatprep.subr.mxu0 0.0
        %551 = vmatpush1.msra.mxu0 %v206
        %552 = vmatprep.subr.mxu0 0.0
        %553 = vmatpush1.msra.mxu0 %v205
        %554 = vmatprep.subr.mxu0 0.0
        %555 = vmatpush1.msra.mxu0 %v204
        %556 = vmatprep.subr.mxu0 0.0
        %557 = vmatpush1.msra.mxu0 %v203
        %558 = vmatprep.subr.mxu0 0.0
        %559 = vmatpush1.msra.mxu0 %v202
        %560 = vmatprep.subr.mxu0 0.0
        %561 = vmatpush1.msra.mxu0 %v201
        %562 = vmatprep.subr.mxu0 0.0
        %563 = vmatpush2.msra.mxu0 0.0
        %564 = vmatprep.subr.mxu0 0.0
        %565 = vmatpush2.msra.mxu0 0.0
        %566 = vmatprep.subr.mxu0 0.0
        %567 = vmatpush2.msra.mxu0 0.0
        %568 = vmatprep.subr.mxu0 0.0
        %569 = vmatpush2.msra.mxu0 0.0
        %570 = vmatprep.subr.mxu0 0.0
        %571 = vmatpush2.msra.mxu0 0.0
        %572 = vmatprep.subr.mxu0 0.0
        %573 = vmatpush2.msra.mxu0 0.0
        %574 = vmatprep.subr.mxu0 0.0
        %575 = vmatpush2.msra.mxu0 0.0
        %576 = vmatprep.subr.mxu0 0.0
        %577 = vmatpush2.msra.mxu0 0.0
        %578 = vmatprep.subr.mxu0 0.0
        %579 = vmatpush2.msra.mxu0 0.0
        %580 = vmatprep.subr.mxu0 0.0
        %581 = vmatpush2.msra.mxu0 0.0
        %582 = vmatprep.subr.mxu0 0.0
        %583 = vmatpush2.msra.mxu0 0.0
        %584 = vmatprep.subr.mxu0 0.0
        %585 = vmatpush2.msra.mxu0 0.0
        %586 = vmatprep.subr.mxu0 0.0
        %587 = vmatpush2.msra.mxu0 0.0
        %588 = vmatprep.subr.mxu0 0.0
        %589 = vmatpush2.msra.mxu0 0.0
        %590 = vmatprep.subr.mxu0 0.0
        %591 = vmatpush2.msra.mxu0 0.0
        %592 = vmatprep.subr.mxu0 0.0
        %593 = vmatpush2.msra.mxu0 0.0
        %594 = vmatprep.mubr.f32.mxu0 0.0
        %595 = vmatmul.mubr.f32.gmra.mxu0 %v525
        %v596 = vpop.f32.mrf.mxu0
        %v597 = vadd.f32 %v529, %v596
        %v598 = vpop.f32.mrf.mxu0
        %599 = vdwg.mxu0
        %v600 = vmul.f32 %v525, 0.8
        %v601 = vmax.f32 %v597, 0.0
        %v602 = vmul.f32 %v601, 0.2
        %v603 = vadd.f32 %v600, %v602
        %s604 = scalar_lea.vmem %s193, 32 [#allocation8]
        %605 = vst [vmem:[%s604] sm:$0xff] %v603
        %s606 = scalar_lea.vmem %s169, 40 [#allocation3]
        %v607 = vld [vmem:[%s606] sm:$0xff]
        %608 = vmatprep.subr.mxu0 0.0
        %609 = vmatpush1.msra.mxu0 %v216
        %610 = vmatprep.subr.mxu0 0.0
        %611 = vmatpush1.msra.mxu0 %v215
        %612 = vmatprep.subr.mxu0 0.0
        %613 = vmatpush1.msra.mxu0 %v214
        %614 = vmatprep.subr.mxu0 0.0
        %615 = vmatpush1.msra.mxu0 %v213
        %616 = vmatprep.subr.mxu0 0.0
        %617 = vmatpush1.msra.mxu0 %v212
        %618 = vmatprep.subr.mxu0 0.0
        %619 = vmatpush1.msra.mxu0 %v211
        %620 = vmatprep.subr.mxu0 0.0
        %621 = vmatpush1.msra.mxu0 %v210
        %622 = vmatprep.subr.mxu0 0.0
        %623 = vmatpush1.msra.mxu0 %v209
        %624 = vmatprep.subr.mxu0 0.0
        %625 = vmatpush1.msra.mxu0 %v208
        %626 = vmatprep.subr.mxu0 0.0
        %627 = vmatpush1.msra.mxu0 %v207
        %628 = vmatprep.subr.mxu0 0.0
        %629 = vmatpush1.msra.mxu0 %v206
        %630 = vmatprep.subr.mxu0 0.0
        %631 = vmatpush1.msra.mxu0 %v205
        %632 = vmatprep.subr.mxu0 0.0
        %633 = vmatpush1.msra.mxu0 %v204
        %634 = vmatprep.subr.mxu0 0.0
        %635 = vmatpush1.msra.mxu0 %v203
        %636 = vmatprep.subr.mxu0 0.0
        %637 = vmatpush1.msra.mxu0 %v202
        %638 = vmatprep.subr.mxu0 0.0
        %639 = vmatpush1.msra.mxu0 %v201
        %640 = vmatprep.subr.mxu0 0.0
        %641 = vmatpush2.msra.mxu0 0.0
        %642 = vmatprep.subr.mxu0 0.0
        %643 = vmatpush2.msra.mxu0 0.0
        %644 = vmatprep.subr.mxu0 0.0
        %645 = vmatpush2.msra.mxu0 0.0
        %646 = vmatprep.subr.mxu0 0.0
        %647 = vmatpush2.msra.mxu0 0.0
        %648 = vmatprep.subr.mxu0 0.0
        %649 = vmatpush2.msra.mxu0 0.0
        %650 = vmatprep.subr.mxu0 0.0
        %651 = vmatpush2.msra.mxu0 0.0
        %652 = vmatprep.subr.mxu0 0.0
        %653 = vmatpush2.msra.mxu0 0.0
        %654 = vmatprep.subr.mxu0 0.0
        %655 = vmatpush2.msra.mxu0 0.0
        %656 = vmatprep.subr.mxu0 0.0
        %657 = vmatpush2.msra.mxu0 0.0
        %658 = vmatprep.subr.mxu0 0.0
        %659 = vmatpush2.msra.mxu0 0.0
        %660 = vmatprep.subr.mxu0 0.0
        %661 = vmatpush2.msra.mxu0 0.0
        %662 = vmatprep.subr.mxu0 0.0
        %663 = vmatpush2.msra.mxu0 0.0
        %664 = vmatprep.subr.mxu0 0.0
        %665 = vmatpush2.msra.mxu0 0.0
        %666 = vmatprep.subr.mxu0 0.0
        %667 = vmatpush2.msra.mxu0 0.0
        %668 = vmatprep.subr.mxu0 0.0
        %669 = vmatpush2.msra.mxu0 0.0
        %670 = vmatprep.subr.mxu0 0.0
        %671 = vmatpush2.msra.mxu0 0.0
        %672 = vmatprep.mubr.f32.mxu0 0.0
        %673 = vmatmul.mubr.f32.gmra.mxu0 %v603
        %v674 = vpop.f32.mrf.mxu0
        %v675 = vadd.f32 %v607, %v674
        %v676 = vpop.f32.mrf.mxu0
        %677 = vdwg.mxu0
        %v678 = vmul.f32 %v603, 0.8
        %v679 = vmax.f32 %v675, 0.0
        %v680 = vmul.f32 %v679, 0.2
        %v681 = vadd.f32 %v678, %v680
        %s682 = scalar_lea.vmem %s193, 40 [#allocation8]
        %683 = vst [vmem:[%s682] sm:$0xff] %v681
        %s684 = scalar_lea.vmem %s169, 48 [#allocation3]
        %v685 = vld [vmem:[%s684] sm:$0xff]
        %686 = vmatprep.subr.mxu0 0.0
        %687 = vmatpush1.msra.mxu0 %v216
        %688 = vmatprep.subr.mxu0 0.0
        %689 = vmatpush1.msra.mxu0 %v215
        %690 = vmatprep.subr.mxu0 0.0
        %691 = vmatpush1.msra.mxu0 %v214
        %692 = vmatprep.subr.mxu0 0.0
        %693 = vmatpush1.msra.mxu0 %v213
        %694 = vmatprep.subr.mxu0 0.0
        %695 = vmatpush1.msra.mxu0 %v212
        %696 = vmatprep.subr.mxu0 0.0
        %697 = vmatpush1.msra.mxu0 %v211
        %698 = vmatprep.subr.mxu0 0.0
        %699 = vmatpush1.msra.mxu0 %v210
        %700 = vmatprep.subr.mxu0 0.0
        %701 = vmatpush1.msra.mxu0 %v209
        %702 = vmatprep.subr.mxu0 0.0
        %703 = vmatpush1.msra.mxu0 %v208
        %704 = vmatprep.subr.mxu0 0.0
        %705 = vmatpush1.msra.mxu0 %v207
        %706 = vmatprep.subr.mxu0 0.0
        %707 = vmatpush1.msra.mxu0 %v206
        %708 = vmatprep.subr.mxu0 0.0
        %709 = vmatpush1.msra.mxu0 %v205
        %710 = vmatprep.subr.mxu0 0.0
        %711 = vmatpush1.msra.mxu0 %v204
        %712 = vmatprep.subr.mxu0 0.0
        %713 = vmatpush1.msra.mxu0 %v203
        %714 = vmatprep.subr.mxu0 0.0
        %715 = vmatpush1.msra.mxu0 %v202
        %716 = vmatprep.subr.mxu0 0.0
        %717 = vmatpush1.msra.mxu0 %v201
        %718 = vmatprep.subr.mxu0 0.0
        %719 = vmatpush2.msra.mxu0 0.0
        %720 = vmatprep.subr.mxu0 0.0
        %721 = vmatpush2.msra.mxu0 0.0
        %722 = vmatprep.subr.mxu0 0.0
        %723 = vmatpush2.msra.mxu0 0.0
        %724 = vmatprep.subr.mxu0 0.0
        %725 = vmatpush2.msra.mxu0 0.0
        %726 = vmatprep.subr.mxu0 0.0
        %727 = vmatpush2.msra.mxu0 0.0
        %728 = vmatprep.subr.mxu0 0.0
        %729 = vmatpush2.msra.mxu0 0.0
        %730 = vmatprep.subr.mxu0 0.0
        %731 = vmatpush2.msra.mxu0 0.0
        %732 = vmatprep.subr.mxu0 0.0
        %733 = vmatpush2.msra.mxu0 0.0
        %734 = vmatprep.subr.mxu0 0.0
        %735 = vmatpush2.msra.mxu0 0.0
        %736 = vmatprep.subr.mxu0 0.0
        %737 = vmatpush2.msra.mxu0 0.0
        %738 = vmatprep.subr.mxu0 0.0
        %739 = vmatpush2.msra.mxu0 0.0
        %740 = vmatprep.subr.mxu0 0.0
        %741 = vmatpush2.msra.mxu0 0.0
        %742 = vmatprep.subr.mxu0 0.0
        %743 = vmatpush2.msra.mxu0 0.0
        %744 = vmatprep.subr.mxu0 0.0
        %745 = vmatpush2.msra.mxu0 0.0
        %746 = vmatprep.subr.mxu0 0.0
        %747 = vmatpush2.msra.mxu0 0.0
        %748 = vmatprep.subr.mxu0 0.0
        %749 = vmatpush2.msra.mxu0 0.0
        %750 = vmatprep.mubr.f32.mxu0 0.0
        %751 = vmatmul.mubr.f32.gmra.mxu0 %v681
        %v752 = vpop.f32.mrf.mxu0
        %v753 = vadd.f32 %v685, %v752
        %v754 = vpop.f32.mrf.mxu0
        %755 = vdwg.mxu0
        %v756 = vmul.f32 %v681, 0.8
        %v757 = vmax.f32 %v753, 0.0
        %v758 = vmul.f32 %v757, 0.2
        %v759 = vadd.f32 %v756, %v758
        %s760 = scalar_lea.vmem %s193, 48 [#allocation8]
        %761 = vst [vmem:[%s760] sm:$0xff] %v759
        %s762 = scalar_lea.vmem %s169, 56 [#allocation3]
        %v763 = vld [vmem:[%s762] sm:$0xff]
        %764 = vmatprep.subr.mxu0 0.0
        %765 = vmatpush1.msra.mxu0 %v216
        %766 = vmatprep.subr.mxu0 0.0
        %767 = vmatpush1.msra.mxu0 %v215
        %768 = vmatprep.subr.mxu0 0.0
        %769 = vmatpush1.msra.mxu0 %v214
        %770 = vmatprep.subr.mxu0 0.0
        %771 = vmatpush1.msra.mxu0 %v213
        %772 = vmatprep.subr.mxu0 0.0
        %773 = vmatpush1.msra.mxu0 %v212
        %774 = vmatprep.subr.mxu0 0.0
        %775 = vmatpush1.msra.mxu0 %v211
        %776 = vmatprep.subr.mxu0 0.0
        %777 = vmatpush1.msra.mxu0 %v210
        %778 = vmatprep.subr.mxu0 0.0
        %779 = vmatpush1.msra.mxu0 %v209
        %780 = vmatprep.subr.mxu0 0.0
        %781 = vmatpush1.msra.mxu0 %v208
        %782 = vmatprep.subr.mxu0 0.0
        %783 = vmatpush1.msra.mxu0 %v207
        %784 = vmatprep.subr.mxu0 0.0
        %785 = vmatpush1.msra.mxu0 %v206
        %786 = vmatprep.subr.mxu0 0.0
        %787 = vmatpush1.msra.mxu0 %v205
        %788 = vmatprep.subr.mxu0 0.0
        %789 = vmatpush1.msra.mxu0 %v204
        %790 = vmatprep.subr.mxu0 0.0
        %791 = vmatpush1.msra.mxu0 %v203
        %792 = vmatprep.subr.mxu0 0.0
        %793 = vmatpush1.msra.mxu0 %v202
        %794 = vmatprep.subr.mxu0 0.0
        %795 = vmatpush1.msra.mxu0 %v201
        %796 = vmatprep.subr.mxu0 0.0
        %797 = vmatpush2.msra.mxu0 0.0
        %798 = vmatprep.subr.mxu0 0.0
        %799 = vmatpush2.msra.mxu0 0.0
        %800 = vmatprep.subr.mxu0 0.0
        %801 = vmatpush2.msra.mxu0 0.0
        %802 = vmatprep.subr.mxu0 0.0
        %803 = vmatpush2.msra.mxu0 0.0
        %804 = vmatprep.subr.mxu0 0.0
        %805 = vmatpush2.msra.mxu0 0.0
        %806 = vmatprep.subr.mxu0 0.0
        %807 = vmatpush2.msra.mxu0 0.0
        %808 = vmatprep.subr.mxu0 0.0
        %809 = vmatpush2.msra.mxu0 0.0
        %810 = vmatprep.subr.mxu0 0.0
        %811 = vmatpush2.msra.mxu0 0.0
        %812 = vmatprep.subr.mxu0 0.0
        %813 = vmatpush2.msra.mxu0 0.0
        %814 = vmatprep.subr.mxu0 0.0
        %815 = vmatpush2.msra.mxu0 0.0
        %816 = vmatprep.subr.mxu0 0.0
        %817 = vmatpush2.msra.mxu0 0.0
        %818 = vmatprep.subr.mxu0 0.0
        %819 = vmatpush2.msra.mxu0 0.0
        %820 = vmatprep.subr.mxu0 0.0
        %821 = vmatpush2.msra.mxu0 0.0
        %822 = vmatprep.subr.mxu0 0.0
        %823 = vmatpush2.msra.mxu0 0.0
        %824 = vmatprep.subr.mxu0 0.0
        %825 = vmatpush2.msra.mxu0 0.0
        %826 = vmatprep.subr.mxu0 0.0
        %827 = vmatpush2.msra.mxu0 0.0
        %828 = vmatprep.mubr.f32.mxu0 0.0
        %829 = vmatmul.mubr.f32.gmra.mxu0 %v759
        %v830 = vpop.f32.mrf.mxu0
        %v831 = vadd.f32 %v763, %v830
        %v832 = vpop.f32.mrf.mxu0
        %833 = vdwg.mxu0
        %v834 = vmul.f32 %v759, 0.8
        %v835 = vmax.f32 %v831, 0.0
        %v836 = vmul.f32 %v835, 0.2
        %v837 = vadd.f32 %v834, %v836
        %s838 = scalar_lea.vmem %s193, 56 [#allocation8]
        %839 = vst [vmem:[%s838] sm:$0xff] %v837
        %840 = vst [vmem:[#allocation2] sm:$0xff] %v837
        %s841 = sand.u32 %s91, 1
        %s842 = scalar_lea.sflag [#allocation5], %s841
        %s843 = sand.u32 %s91, 1
        %s844 = smul.addr %s843, 64
        %s845 = scalar_lea.vmem [#allocation8], %s844
        // Predicated region
        $region41: #{tpu_custom_call.1} parent=27 // pred_check
          %p846 = pneg %p101
        $region42: #{tpu_custom_call.1} parent=27 // pred_check_branch
          %848 = sbr.rel (%p846) target = $region44
        $region43: #{tpu_custom_call.1} parent=27 // pred_region
          %s849 = smul.u32 8, %s25
          %s851 = ssub.s32 1024, 1024
          %852 = vsyncadd %s842, %s851
          %s853 = sadd.s32 %s24, %s849
          %s854 = smul.addr %s853, 128
          %s855 = scalar_lea.hbm %s2, %s854
          %s856 = sshll.u32 %s845, 4
          %s857 = int_to_ptr.vmem [resolvable:$true] %s856
          %862 = dma.vmem_to_hbm [thread:$0]  %s857, 1024, %s855, %s842, 128, 128, 8
        $region44: #{tpu_custom_call.1} parent=27 // pred_fallthru
          _
      $region28: #{tpu_custom_call.1} parent=5 // pred_fallthru
        _
      %p863 = scmp.le.s32.totalorder 2, %s15
      // Predicated region
      $region45: #{tpu_custom_call.1} parent=5 // pred_check
        %p864 = pneg %p863
      $region46: #{tpu_custom_call.1} parent=5 // pred_check_branch
        %866 = sbr.rel (%p864) target = $region48
      $region47: #{tpu_custom_call.1} parent=5 // pred_region
        %s867 = ssub.s32 %s15, 2
        // Predicated region
        $region49: #{tpu_custom_call.1} parent=47 // pred_check
          %p868 = pneg %p107
        $region50: #{tpu_custom_call.1} parent=47 // pred_check_branch
          %870 = sbr.rel (%p868) target = $region52
        $region51: #{tpu_custom_call.1} parent=47 // pred_region
          %s871 = sand.u32 %s92, 1
          %s872 = scalar_lea.sflag [#allocation5], %s871
          %s873 = sand.u32 %s92, 1
          %s874 = smul.addr %s873, 64
          %s875 = scalar_lea.vmem [#allocation8], %s874
          %876 = dma.done %s872, 1024
        $region52: #{tpu_custom_call.1} parent=47 // pred_fallthru
          _
      $region48: #{tpu_custom_call.1} parent=5 // pred_fallthru
        _
    $region6: #{tpu_custom_call.1} parent=1 // loop_footer
      %s19 = sadd.s32 1, %s15
    $region7: #{tpu_custom_call.1} parent=1 // loop_footer_branch
      %14 = sbr.rel target = $region3
    $region8: #{tpu_custom_call.1} parent=1 // loop_exit
      _
    %877 = vsyncpa [#allocation4], 1
    %s878 = scalar_lea.sflag [#allocation4], 1
    %879 = vsyncpa %s878, 1
    %880 = vsyncpa [#allocation7], 1
    %881 = vsyncpa [#allocation5], 1
    %s882 = scalar_lea.sflag [#allocation5], 1
    %883 = vsyncpa %s882, 1

</llo_original>
